<compile_context>
chip_gen: v7x
topology: tpu7x:2x2x1
jax: 0.10.0
libtpu: 0.0.40
codegen_flags: <defaults>
</compile_context>

<pallas_src>
import jax
import jax.numpy as jnp
from jax.experimental import pallas as pl
from jax.experimental.pallas import tpu as pltpu

_MIB = 1024 * 1024


def _conv1x1_silu_kernel(w_ref, x_ref, o_ref):
    # w_ref: (tn, C1)       weight tile (compute dtype)
    # x_ref: (C1, tile_m)   activation tile, spatial axis in lanes (compute dtype)
    # o_ref: (tn, tile_m)   output tile (out dtype), lane-dense stores
    acc = jnp.dot(w_ref[...], x_ref[...], preferred_element_type=jnp.float32)
    o_ref[...] = (acc * jax.nn.sigmoid(acc)).astype(o_ref.dtype)  # SiLU in f32


def _tpu_vmem_capacity_bytes():
    cap = 64 * _MIB  # conservative default (v7x per-core VMEM)
    try:
        info = pltpu.get_tpu_info()
        cap = int(getattr(info, "vmem_capacity_bytes", cap)) or cap
    except Exception:
        pass
    return cap


def _pick_tiles(n_batch, c1, c2, hw, x_bytes, w_bytes, out_bytes, tile_budget):
    """Choose (tn, tile_m, deep_x) so the pipelined working set fits VMEM."""
    # --- C2 tiling: only when the double-buffered FULL weight threatens VMEM.
    weight_budget = max(8 * _MIB, tile_budget // 3)
    tn = c2
    if 2 * c2 * c1 * w_bytes > weight_budget and c2 % 128 == 0:
        tn = 128
        for cand in (512, 256):
            if c2 % cand == 0 and 2 * cand * c1 * w_bytes <= weight_budget:
                tn = cand
                break
    # TODO(synk): for extreme C1 (single x tile alone exceeding VMEM) add a
    # C1-reduction grid axis with an f32 accumulator; not needed for realistic
    # FFCA channel counts.

    def working_set(tile_m, x_bufs=2):
        return (2 * tn * c1 * w_bytes                 # weight, double-buffered
                + x_bufs * c1 * tile_m * x_bytes      # activations
                + 2 * tn * tile_m * out_bytes         # output, double-buffered
                + 4 * tn * tile_m)                    # f32 acc / SiLU headroom

    # --- spatial tile: largest multiple of 128 whose working set fits.
    if hw <= 128:
        tile_m = hw
    else:
        cap128 = (hw // 128) * 128
        tile_m = 128
        for cand in (16384, 8192, 4096, 2048, 1024, 512, 256, 128):
            if cand > cap128:
                continue
            if working_set(cand) <= tile_budget:
                tile_m = cand
                break

    # --- guarantee enough grid steps for DMA/compute overlap and to feed both
    #     v7x TensorCores through the "parallel" axes.
    j_tiles = pl.cdiv(c2, tn)
    m_tiles = pl.cdiv(hw, tile_m)
    if n_batch * j_tiles * m_tiles < 4 and hw > 128:
        want_m = -(-4 // (n_batch * j_tiles))                # ceil(4 / groups)
        cand = max(128, (hw // want_m) // 128 * 128)
        if cand < tile_m:
            tile_m = cand
            m_tiles = pl.cdiv(hw, tile_m)

    # --- deepen the activation pipeline only in the many-small-DMA regime.
    deep_x = (tile_m <= 256 and c1 >= 1024 and m_tiles >= 4
              and working_set(tile_m, x_bufs=3) <= tile_budget)
    return tn, tile_m, deep_x


def conv_without_bn(x_nchw, weight_oihw, *, compute_dtype=jnp.bfloat16,
                    out_dtype=None):
    """Forward pass of Conv_withoutBN with default args (k=1, s=1, act=SiLU).

    x_nchw:      (N, C1, H, W)
    weight_oihw: (C2, C1, 1, 1)   (nn.Conv2d weight layout)
    compute_dtype: dtype for x/w data movement and MXU operands.  Default bf16
        halves HBM read bytes of this bandwidth-bound kernel (and is free when
        the surrounding network already runs in bf16); accumulation and SiLU
        stay f32.  Pass None for exact PyTorch-f32 numerics.
    out_dtype:   output dtype (default: input dtype).
    returns:     (N, C2, H, W)
    """
    N, C1, H, W = x_nchw.shape
    C2 = weight_oihw.shape[0]
    assert weight_oihw.shape == (C2, C1, 1, 1)

    out_dtype = x_nchw.dtype if out_dtype is None else out_dtype
    HW = H * W

    # NCHW is already contiguous as (N, C1, H*W): these reshapes are free.
    x3 = x_nchw.reshape(N, C1, HW)
    w_mat = weight_oihw.reshape(C2, C1)
    if compute_dtype is not None:
        x3 = x3.astype(compute_dtype)
        w_mat = w_mat.astype(compute_dtype)

    x_bytes = jnp.dtype(x3.dtype).itemsize
    w_bytes = jnp.dtype(w_mat.dtype).itemsize
    o_bytes = jnp.dtype(out_dtype).itemsize

    # Generation-aware budgets: v5e/v6e have 128 MiB VMEM, v7x 64 MiB per core.
    vmem_cap = _tpu_vmem_capacity_bytes()
    tile_budget = 48 * _MIB if vmem_cap >= 128 * _MIB else 24 * _MIB

    tn, tile_m, deep_x = _pick_tiles(N, C1, C2, HW, x_bytes, w_bytes, o_bytes,
                                     tile_budget)
    j_tiles = pl.cdiv(C2, tn)
    m_tiles = pl.cdiv(HW, tile_m)

    # Scoped-VMEM limit: raise only as far as the actual working set needs,
    # never (much) beyond the part's capacity.
    x_bufs = 3 if deep_x else 2
    est = (2 * tn * C1 * w_bytes + x_bufs * C1 * tile_m * x_bytes
           + 2 * tn * tile_m * o_bytes + 4 * tn * tile_m)
    vmem_limit = max(32 * _MIB, est + 8 * _MIB)
    vmem_limit = min(vmem_limit, max(32 * _MIB, int(vmem_cap * 0.75)))

    # Grid order: keep the larger re-usable operand VMEM-resident across the
    # innermost axis so the grid walk minimizes redundant HBM reads.
    read_j_inner = C1 * HW * x_bytes + m_tiles * C2 * C1 * w_bytes  # x resident
    read_m_inner = j_tiles * C1 * HW * x_bytes + C2 * C1 * w_bytes  # w resident
    if read_j_inner < read_m_inner:
        grid = (N, m_tiles, j_tiles)
        w_map = lambda n, m, j: (j, 0)
        x_map = lambda n, m, j: (n, 0, m)
        o_map = lambda n, m, j: (n, j, m)
    else:
        grid = (N, j_tiles, m_tiles)
        w_map = lambda n, j, m: (j, 0)
        x_map = lambda n, j, m: (n, 0, m)
        o_map = lambda n, j, m: (n, j, m)

    x_block = (None, C1, tile_m)
    if deep_x:
        x_spec = pl.BlockSpec(x_block, x_map, pipeline_mode=pl.Buffered(3))
    else:
        x_spec = pl.BlockSpec(x_block, x_map)

    out3 = pl.pallas_call(
        _conv1x1_silu_kernel,
        out_shape=jax.ShapeDtypeStruct((N, C2, HW), out_dtype),
        grid_spec=pltpu.PrefetchScalarGridSpec(
            num_scalar_prefetch=0,
            grid=grid,
            in_specs=[
                pl.BlockSpec((tn, C1), w_map),  # weight tile
                x_spec,                         # activation tile (batch squeezed)
            ],
            out_specs=pl.BlockSpec((None, tn, tile_m), o_map),
        ),
        compiler_params=pltpu.CompilerParams(
            dimension_semantics=("parallel", "parallel", "parallel"),
            vmem_limit_bytes=int(vmem_limit),
        ),
    )(w_mat, x3)

    # (N, C2, H*W) -> (N, C2, H, W): free reshape, no transpose.
    return out3.reshape(N, C2, H, W)


if __name__ == "__main__":
    key = jax.random.PRNGKey(0)
    k_x, k_w = jax.random.split(key)

    # Small shapes consistent with the module: batch=2, c1=4, c2=8, 16x16 spatial
    N, C1, C2, H, W = 2, 4, 8, 16, 16

    x = jax.random.normal(k_x, (N, C1, H, W), dtype=jnp.float32)
    fan_in = C1  # k=1
    bound = 1.0 / jnp.sqrt(fan_in)
    weight = jax.random.uniform(
        k_w, (C2, C1, 1, 1), dtype=jnp.float32, minval=-bound, maxval=bound
    )

    # Reference in plain JAX (1x1 conv + SiLU), f32.
    ref = jnp.einsum("nchw,oc->nohw", x, weight.reshape(C2, C1))
    ref = ref * jax.nn.sigmoid(ref)

    # Exact-f32 path (matches the PyTorch module's numerics).
    y32 = jax.block_until_ready(conv_without_bn(x, weight, compute_dtype=None))
    assert y32.shape == (N, C2, H, W)
    assert jnp.allclose(y32, ref, atol=1e-5, rtol=1e-5)

    # Default path: bf16 data movement, f32 accumulation + f32 SiLU.
    ybf = jax.block_until_ready(conv_without_bn(x, weight))
    assert ybf.shape == (N, C2, H, W)
    assert jnp.allclose(ybf, ref, atol=5e-2, rtol=5e-2)

    print("KERNEL_OK")
</pallas_src>

<mosaic_0001>
module attributes {stable_mosaic.version = 11 : i64} {
  func.func @_conv1x1_silu_kernel(%arg0: i32, %arg1: i32, %arg2: i32, %arg3: memref<8x4xf32, #tpu.memory_space<vmem>>, %arg4: memref<1x4x128xf32, #tpu.memory_space<vmem>>, %arg5: memref<1x8x128xf32, #tpu.memory_space<vmem>>) attributes {dimension_semantics = [#tpu.dimension_semantics<parallel>, #tpu.dimension_semantics<parallel>, #tpu.dimension_semantics<parallel>], iteration_bounds = array<i64: 2, 1, 2>, scalar_prefetch = 0 : i64, scratch_operands = 0 : i64, tpu.core_type = #tpu.core_type<tc>, window_params = [{transform_indices = @transform_0, window_bounds = array<i64: 8, 4>}, {transform_indices = @transform_1, window_bounds = array<i64: 1, 4, 128>}, {transform_indices = @transform_2, window_bounds = array<i64: 1, 8, 128>}]} {
    %c0 = arith.constant 0 : index
    %c0_0 = arith.constant 0 : index
    %0 = vector.load %arg3[%c0, %c0_0] : memref<8x4xf32, #tpu.memory_space<vmem>>, vector<8x4xf32>
    %c0_1 = arith.constant 0 : index
    %c0_2 = arith.constant 0 : index
    %c0_3 = arith.constant 0 : index
    %1 = vector.load %arg4[%c0_1, %c0_2, %c0_3] : memref<1x4x128xf32, #tpu.memory_space<vmem>>, vector<1x4x128xf32>
    %2 = vector.shape_cast %1 : vector<1x4x128xf32> to vector<4x128xf32>
    %cst = arith.constant dense<0.000000e+00> : vector<8x128xf32>
    %3 = tpu.matmul %0, %2, %cst {dimension_numbers = #tpu.dot_dimension_numbers<[1], [0], [0], [1], [0, 0, 1, 1], [], []>} : vector<8x4xf32>, vector<4x128xf32>, vector<8x128xf32> -> vector<8x128xf32>
    %4 = arith.negf %3 : vector<8x128xf32>
    %5 = math.exp %4 : vector<8x128xf32>
    %cst_4 = arith.constant 1.000000e+00 : f32
    %6 = vector.broadcast %cst_4 : f32 to vector<8x128xf32>
    %7 = arith.addf %6, %5 : vector<8x128xf32>
    %8 = arith.divf %6, %7 : vector<8x128xf32>
    %9 = arith.mulf %3, %8 : vector<8x128xf32>
    %c0_5 = arith.constant 0 : index
    %c0_6 = arith.constant 0 : index
    %c0_7 = arith.constant 0 : index
    %10 = vector.load %arg5[%c0_5, %c0_6, %c0_7] : memref<1x8x128xf32, #tpu.memory_space<vmem>>, vector<1x8x128xf32>
    %11 = vector.shape_cast %10 : vector<1x8x128xf32> to vector<8x128xf32>
    %12 = vector.shape_cast %9 : vector<8x128xf32> to vector<1x8x128xf32>
    tpu.vector_store %arg5[%c0_5, %c0_6, %c0_7], %12 {strides = array<i32>} : memref<1x8x128xf32, #tpu.memory_space<vmem>>, vector<1x8x128xf32>,
    return
  }
  func.func @transform_0(%arg0: i32, %arg1: i32, %arg2: i32) -> (i32, i32) {
    %c0_i32 = arith.constant 0 : i32
    %c0_i32_0 = arith.constant 0 : i32
    return %arg1, %c0_i32 : i32, i32
  }
  func.func @transform_1(%arg0: i32, %arg1: i32, %arg2: i32) -> (i32, i32, i32) {
    %c0_i32 = arith.constant 0 : i32
    %c0_i32_0 = arith.constant 0 : i32
    return %arg0, %c0_i32, %arg2 : i32, i32, i32
  }
  func.func @transform_2(%arg0: i32, %arg1: i32, %arg2: i32) -> (i32, i32, i32) {
    %c0_i32 = arith.constant 0 : i32
    return %arg0, %arg1, %arg2 : i32, i32, i32
  }
}

</mosaic_0001>

<llo_original>
// kernel: tpu_custom_call.1
$region0: #{tpu_custom_call.1}
  #allocation0 [shape = 'u32[]', space=smem, size = 0x4, offset = 0x4, fixed_abs, tag = 'smem constant byte address 0x4 - core index']
  #allocation1 [shape = 'u32[144,128]{1,0:T(1,128)}', space=vmem, size = 0x12000, scoped, tag = 'internal scratch']
  %s0 = inlined_call_operand.vmem [shape: f32[8,4], index: 0, kind: input, shape index: {}]
  %s1 = inlined_call_operand.hbm [shape: f32[2,4,256], index: 1, kind: input, shape index: {}]
  %s2 = inlined_call_operand.hbm [shape: f32[2,8,256], index: 2, kind: output, shape index: {}]
  %s3 = sld [smem:[#allocation0]]
  $region45: #{tpu_custom_call.1} parent=0
    _
  %s5 = ssub.s32 1, %s3
  %s6 = scalar_select 0, %s5, %s3
  $region1: #{tpu_custom_call.1} parent=0
    #allocation2 [shape = 'u8[4096]{0}', space=vmem, size = 0x1000, scoped, tag = 'input window, operand 1']
    #allocation3 [shape = 's32[2]{0}', space=sflag, size = 0x8, scoped, tag = 'scoped memory for tpu_custom_call.1']
    #allocation4 [shape = 's32[2]{0}', space=sflag, size = 0x8, scoped, tag = 'scoped memory for tpu_custom_call.1']
    #allocation5 [shape = 'u8[8192]{0}', space=vmem, size = 0x2000, scoped, tag = 'output window, operand 0']
    %7 = vsyncpa [#allocation3], 0
    %s8 = scalar_lea.sflag [#allocation3], 1
    %9 = vsyncpa %s8, 0
    %10 = vsyncpa [#allocation4], 0
    %s11 = scalar_lea.sflag [#allocation4], 1
    %12 = vsyncpa %s11, 0
    loop: start=0, step=1, limit=6
    $region2: #{tpu_custom_call.1} parent=1 // loop_pre_header
      _
    $region3: #{tpu_custom_call.1} parent=1 // loop_header
      %s14 = sphi 0, %s18
      %p15 = scmp.ge.s32.totalorder %s14, 6
      %s21 = sphi 0, %s40
      %s22 = sphi 0, %s36
      %s23 = sphi 0, %s32
      %s24 = sphi 0, %s21
      %s25 = sphi 0, %s22
      %s26 = sphi 0, %s23
      %s27 = sphi 0, %s24
      %s28 = sphi 0, %s25
      %s29 = sphi 0, %s26
      %s43 = sphi 0, %s45
      %s46 = sphi 0, %s43
      %s47 = sphi 0, %s46
      %s63 = sphi 0, %s47
      %s71 = sphi 0, %s73
      %s74 = sphi 0, %s71
      %s75 = sphi 0, %s74
      %s91 = sphi 0, %s75
      %s101 = sphi 0, %s103
      %s104 = sphi 0, %s101
      %s105 = sphi 0, %s104
      %s121 = sphi 0, %s105
    $region4: #{tpu_custom_call.1} parent=1 // loop_header_branch
      %17 = sbr.rel (%p15) target = $region8
    $region5: #{tpu_custom_call.1} parent=1 // loop_body
      %s19 = ssub.s32 %s14, 1
      %s20 = ssub.s32 %s14, 2
      %s30 = sadd.s32 1, %s23
      %p31 = scmp.ge.s32.totalorder %s30, 2
      %s32 = scalar_select %p31, 0, %s30
      %s33 = sadd.s32 1, %s22
      %s34 = scalar_select %p31, %s33, %s22
      %p35 = scmp.ge.s32.totalorder %s34, 1
      %s36 = scalar_select %p35, 0, %s34
      %s37 = sadd.s32 1, %s21
      %s38 = scalar_select %p35, %s37, %s21
      %p39 = scmp.ge.s32.totalorder %s38, 2
      %s40 = scalar_select %p39, 0, %s38
      %s41 = ssub.s32 %s22, %s36
      %p42 = scmp.eq.s32.totalorder %s41, 0
      %s44 = sadd.s32 %s43, 1
      %s45 = scalar_select %p42, %s43, %s44
      %p48 = pneg %p42
      %p49 = scmp.eq.s32.totalorder %s14, 3
      %p50 = por %p48, %p49
      %p51 = scmp.ne.s32.totalorder %s43, %s46
      %p52 = scmp.eq.s32.totalorder %s14, 0
      %p53 = por %p51, %p52
      %p54 = scmp.ne.s32.totalorder %s43, %s46
      %p55 = scmp.eq.s32.totalorder %s19, 3
      %p56 = por %p54, %p55
      %p57 = scmp.ne.s32.totalorder %s46, %s47
      %p58 = scmp.eq.s32.totalorder %s19, 0
      %p59 = por %p57, %p58
      %p60 = scmp.ne.s32.totalorder %s46, %s47
      %p61 = scmp.eq.s32.totalorder %s20, 3
      %p62 = por %p60, %p61
      %p64 = scmp.ne.s32.totalorder %s47, %s63
      %p65 = scmp.eq.s32.totalorder %s20, 0
      %p66 = por %p64, %p65
      %s67 = ssub.s32 %s21, %s40
      %s68 = ssub.s32 %s23, %s32
      %s69 = sor.u32 %s67, %s68
      %p70 = scmp.eq.s32.totalorder %s69, 0
      %s72 = sadd.s32 %s71, 1
      %s73 = scalar_select %p70, %s71, %s72
      %p76 = pneg %p70
      %p77 = scmp.eq.s32.totalorder %s14, 3
      %p78 = por %p76, %p77
      %p79 = scmp.ne.s32.totalorder %s71, %s74
      %p80 = scmp.eq.s32.totalorder %s14, 0
      %p81 = por %p79, %p80
      %p82 = scmp.ne.s32.totalorder %s71, %s74
      %p83 = scmp.eq.s32.totalorder %s19, 3
      %p84 = por %p82, %p83
      %p85 = scmp.ne.s32.totalorder %s74, %s75
      %p86 = scmp.eq.s32.totalorder %s19, 0
      %p87 = por %p85, %p86
      %p88 = scmp.ne.s32.totalorder %s74, %s75
      %p89 = scmp.eq.s32.totalorder %s20, 3
      %p90 = por %p88, %p89
      %p92 = scmp.ne.s32.totalorder %s75, %s91
      %p93 = scmp.eq.s32.totalorder %s20, 0
      %p94 = por %p92, %p93
      %s95 = ssub.s32 %s21, %s40
      %s96 = ssub.s32 %s22, %s36
      %s97 = sor.u32 %s95, %s96
      %s98 = ssub.s32 %s23, %s32
      %s99 = sor.u32 %s97, %s98
      %p100 = scmp.eq.s32.totalorder %s99, 0
      %s102 = sadd.s32 %s101, 1
      %s103 = scalar_select %p100, %s101, %s102
      %p106 = pneg %p100
      %p107 = scmp.eq.s32.totalorder %s14, 3
      %p108 = por %p106, %p107
      %p109 = scmp.ne.s32.totalorder %s101, %s104
      %p110 = scmp.eq.s32.totalorder %s14, 0
      %p111 = por %p109, %p110
      %p112 = scmp.ne.s32.totalorder %s101, %s104
      %p113 = scmp.eq.s32.totalorder %s19, 3
      %p114 = por %p112, %p113
      %p115 = scmp.ne.s32.totalorder %s104, %s105
      %p116 = scmp.eq.s32.totalorder %s19, 0
      %p117 = por %p115, %p116
      %p118 = scmp.ne.s32.totalorder %s104, %s105
      %p119 = scmp.eq.s32.totalorder %s20, 3
      %p120 = por %p118, %p119
      %p122 = scmp.ne.s32.totalorder %s105, %s121
      %p123 = scmp.eq.s32.totalorder %s20, 0
      %p124 = por %p122, %p123
      %p125 = scmp.le.s32.totalorder 1, %s14
      %p126 = scmp.lt.s32.totalorder %s14, 5
      %p127 = pnand %p125, %p126
      %p128 = pneg %p127
      // Predicated region
      $region9: #{tpu_custom_call.1} parent=5 // pred_check
        _
      $region10: #{tpu_custom_call.1} parent=5 // pred_check_branch
        %130 = sbr.rel (%p127) target = $region12
      $region11: #{tpu_custom_call.1} parent=5 // pred_region
        %s131 = ssub.s32 %s14, 1
        // Predicated region
        $region13: #{tpu_custom_call.1} parent=11 // pred_check
          %p132 = pneg %p59
        $region14: #{tpu_custom_call.1} parent=11 // pred_check_branch
          %134 = sbr.rel (%p132) target = $region16
        $region15: #{tpu_custom_call.1} parent=11 // pred_region
          %p135 = scmp.lt.s32.totalorder %s25, 0
          %s136 = scalar_select %p135, %s25, 0
          %s137 = smul.addr %s136, 8
          %s138 = scalar_lea.vmem %s0, %s137
        $region16: #{tpu_custom_call.1} parent=11 // pred_fallthru
          _
      $region12: #{tpu_custom_call.1} parent=5 // pred_fallthru
        _
      %p139 = scmp.lt.s32.totalorder %s14, 4
      // Predicated region
      $region17: #{tpu_custom_call.1} parent=5 // pred_check
        %p140 = pneg %p139
      $region18: #{tpu_custom_call.1} parent=5 // pred_check_branch
        %142 = sbr.rel (%p140) target = $region20
      $region19: #{tpu_custom_call.1} parent=5 // pred_region
        // Predicated region
        $region21: #{tpu_custom_call.1} parent=19 // pred_check
          %p143 = pneg %p81
        $region22: #{tpu_custom_call.1} parent=19 // pred_check_branch
          %145 = sbr.rel (%p143) target = $region24
        $region23: #{tpu_custom_call.1} parent=19 // pred_region
          %s146 = sand.u32 %s71, 1
          %s147 = scalar_lea.sflag [#allocation3], %s146
          %s148 = sand.u32 %s71, 1
          %s149 = smul.addr %s148, 4
          %s150 = scalar_lea.vmem [#allocation2], %s149
          %s152 = ssub.s32 64, 64
          %153 = vsyncadd %s147, %s152
          %s154 = smul.addr %s21, 2
          %s155 = sadd.s32 %s23, %s154
          %s156 = smul.addr %s155, 64
          %s157 = scalar_lea.hbm %s1, %s156
          %s159 = sshll.u32 %s150, 4
          %s160 = int_to_ptr.vmem [resolvable:$true] %s159
          %162 = dma.hbm_to_vmem [thread:$0]  %s157, 64, %s160, %s147
        $region24: #{tpu_custom_call.1} parent=19 // pred_fallthru
          _
      $region20: #{tpu_custom_call.1} parent=5 // pred_fallthru
        _
      %p163 = scmp.le.s32.totalorder 1, %s14
      %p164 = scmp.lt.s32.totalorder %s14, 5
      %p165 = pnand %p163, %p164
      %p166 = pneg %p165
      // Predicated region
      $region25: #{tpu_custom_call.1} parent=5 // pred_check
        _
      $region26: #{tpu_custom_call.1} parent=5 // pred_check_branch
        %168 = sbr.rel (%p165) target = $region28
      $region27: #{tpu_custom_call.1} parent=5 // pred_region
        %s169 = ssub.s32 %s14, 1
        %s170 = sand.u32 %s74, 1
        %s171 = scalar_lea.sflag [#allocation3], %s170
        %s172 = sand.u32 %s74, 1
        %s173 = smul.addr %s172, 4
        %s174 = scalar_lea.vmem [#allocation2], %s173
        // Predicated region
        $region29: #{tpu_custom_call.1} parent=27 // pred_check
          %p175 = pneg %p87
        $region30: #{tpu_custom_call.1} parent=27 // pred_check_branch
          %177 = sbr.rel (%p175) target = $region32
        $region31: #{tpu_custom_call.1} parent=27 // pred_region
          %178 = dma.done %s171, 64
        $region32: #{tpu_custom_call.1} parent=27 // pred_fallthru
          _
        %p179 = scmp.lt.s32.totalorder %s25, 0
        %s180 = scalar_select %p179, %s25, 0
        %s181 = smul.addr %s180, 8
        %s182 = scalar_lea.vmem %s0, %s181
        %p183 = pneg %p59
        %p184 = pneg %p56
        %s185 = sand.u32 %s74, 1
        %s186 = scalar_lea.sflag [#allocation3], %s185
        %s187 = sand.u32 %s74, 1
        %s188 = smul.addr %s187, 4
        %s189 = scalar_lea.vmem [#allocation2], %s188
        %p190 = pneg %p87
        %p191 = pneg %p84
        %p192 = pneg %p117
        %p193 = pneg %p114
        %s194 = sand.u32 %s104, 1
        %s195 = scalar_lea.sflag [#allocation4], %s194
        %s196 = sand.u32 %s104, 1
        %s197 = smul.addr %s196, 8
        %s198 = scalar_lea.vmem [#allocation5], %s197
        %p199 = scmp.lt.s32.totalorder %s25, 0
        %s200 = scalar_select %p199, %s25, 0
        %s201 = smul.addr %s200, 8
        %s202 = scalar_lea.vmem %s0, %s201
        %v203 = vld [vmem:[%s202] sm:$0xff]
        %v204 = vld [vmem:[%s174] sm:$0xf]
        %vm205 = vcmask 31744
        %v207 = vsel %vm205, %v203, 0
        %vm209 = vcmask 1043456
        %v211 = vsel %vm209, %v204, 0
        %213 = vmatprep.subr.mxu0 0.0
        %214 = vmatpush1.msra.mxu0 %v211
        %215 = vmatprep.subr.mxu0 0.0
        %216 = vmatpush1.msra.mxu0 0.0
        %217 = vmatprep.subr.mxu0 0.0
        %218 = vmatpush1.msra.mxu0 0.0
        %219 = vmatprep.subr.mxu0 0.0
        %220 = vmatpush1.msra.mxu0 0.0
        %221 = vmatprep.subr.mxu0 0.0
        %222 = vmatpush1.msra.mxu0 0.0
        %223 = vmatprep.subr.mxu0 0.0
        %224 = vmatpush1.msra.mxu0 0.0
        %225 = vmatprep.subr.mxu0 0.0
        %226 = vmatpush1.msra.mxu0 0.0
        %227 = vmatprep.subr.mxu0 0.0
        %228 = vmatpush1.msra.mxu0 0.0
        %229 = vmatprep.subr.mxu0 0.0
        %230 = vmatpush1.msra.mxu0 0.0
        %231 = vmatprep.subr.mxu0 0.0
        %232 = vmatpush1.msra.mxu0 0.0
        %233 = vmatprep.subr.mxu0 0.0
        %234 = vmatpush1.msra.mxu0 0.0
        %235 = vmatprep.subr.mxu0 0.0
        %236 = vmatpush1.msra.mxu0 0.0
        %237 = vmatprep.subr.mxu0 0.0
        %238 = vmatpush1.msra.mxu0 0.0
        %239 = vmatprep.subr.mxu0 0.0
        %240 = vmatpush1.msra.mxu0 0.0
        %241 = vmatprep.subr.mxu0 0.0
        %242 = vmatpush1.msra.mxu0 0.0
        %243 = vmatprep.subr.mxu0 0.0
        %244 = vmatpush1.msra.mxu0 0.0
        %245 = vmatprep.subr.mxu0 0.0
        %246 = vmatpush1.msra.mxu0 0.0
        %247 = vmatprep.subr.mxu0 0.0
        %248 = vmatpush1.msra.mxu0 0.0
        %249 = vmatprep.subr.mxu0 0.0
        %250 = vmatpush1.msra.mxu0 0.0
        %251 = vmatprep.subr.mxu0 0.0
        %252 = vmatpush1.msra.mxu0 0.0
        %253 = vmatprep.subr.mxu0 0.0
        %254 = vmatpush1.msra.mxu0 0.0
        %255 = vmatprep.subr.mxu0 0.0
        %256 = vmatpush1.msra.mxu0 0.0
        %257 = vmatprep.subr.mxu0 0.0
        %258 = vmatpush1.msra.mxu0 0.0
        %259 = vmatprep.subr.mxu0 0.0
        %260 = vmatpush1.msra.mxu0 0.0
        %261 = vmatprep.subr.mxu0 0.0
        %262 = vmatpush1.msra.mxu0 0.0
        %263 = vmatprep.subr.mxu0 0.0
        %264 = vmatpush1.msra.mxu0 0.0
        %265 = vmatprep.subr.mxu0 0.0
        %266 = vmatpush1.msra.mxu0 0.0
        %267 = vmatprep.subr.mxu0 0.0
        %268 = vmatpush1.msra.mxu0 0.0
        %269 = vmatprep.subr.mxu0 0.0
        %270 = vmatpush1.msra.mxu0 0.0
        %271 = vmatprep.subr.mxu0 0.0
        %272 = vmatpush1.msra.mxu0 0.0
        %273 = vmatprep.subr.mxu0 0.0
        %274 = vmatpush1.msra.mxu0 0.0
        %275 = vmatprep.subr.mxu0 0.0
        %276 = vmatpush1.msra.mxu0 0.0
        %277 = vmatprep.mubr.f32.mxu0 0.0
        %278 = vmatmul.mubr.f32.gmra.mrb[0].mxu0 %v207
        %v279 = vpop.f32.mrb[0].mxu0
        %v280 = vadd.f32 0.0, %v279
        %v281 = vpop.f32.mrb[0].mxu0
        %282 = vdwg.mxu0
        %v283 = vxor.u32 %v280, 2147483648
        %v284 = vmul.f32 %v283, 1.442695
        %v285 = vpow.pop %v284
        %v286 = vadd.f32 %v285, 1.0
        %v287 = vrcp.pop %v286
        %v288 = vmul.f32 1.0, %v287
        %v289 = vmul.f32 %v280, %v288
        %290 = vst [vmem:[%s198] sm:$0xff] %v289
        %s291 = sand.u32 %s104, 1
        %s292 = scalar_lea.sflag [#allocation4], %s291
        %s293 = sand.u32 %s104, 1
        %s294 = smul.addr %s293, 8
        %s295 = scalar_lea.vmem [#allocation5], %s294
        // Predicated region
        $region33: #{tpu_custom_call.1} parent=27 // pred_check
          %p296 = pneg %p114
        $region34: #{tpu_custom_call.1} parent=27 // pred_check_branch
          %298 = sbr.rel (%p296) target = $region36
        $region35: #{tpu_custom_call.1} parent=27 // pred_region
          %s300 = ssub.s32 128, 128
          %301 = vsyncadd %s292, %s300
          %s302 = smul.addr %s25, 2
          %s303 = sadd.s32 %s26, %s302
          %s304 = smul.addr %s24, 2
          %s305 = sadd.s32 %s303, %s304
          %s306 = smul.addr %s305, 128
          %s307 = scalar_lea.hbm %s2, %s306
          %s309 = sshll.u32 %s295, 4
          %s310 = int_to_ptr.vmem [resolvable:$true] %s309
          %312 = dma.vmem_to_hbm [thread:$0]  %s310, 128, %s307, %s292
        $region36: #{tpu_custom_call.1} parent=27 // pred_fallthru
          _
      $region28: #{tpu_custom_call.1} parent=5 // pred_fallthru
        _
      %p313 = scmp.le.s32.totalorder 2, %s14
      // Predicated region
      $region37: #{tpu_custom_call.1} parent=5 // pred_check
        %p314 = pneg %p313
      $region38: #{tpu_custom_call.1} parent=5 // pred_check_branch
        %316 = sbr.rel (%p314) target = $region40
      $region39: #{tpu_custom_call.1} parent=5 // pred_region
        %s317 = ssub.s32 %s14, 2
        // Predicated region
        $region41: #{tpu_custom_call.1} parent=39 // pred_check
          %p318 = pneg %p120
        $region42: #{tpu_custom_call.1} parent=39 // pred_check_branch
          %320 = sbr.rel (%p318) target = $region44
        $region43: #{tpu_custom_call.1} parent=39 // pred_region
          %s321 = sand.u32 %s105, 1
          %s322 = scalar_lea.sflag [#allocation4], %s321
          %s323 = sand.u32 %s105, 1
          %s324 = smul.addr %s323, 8
          %s325 = scalar_lea.vmem [#allocation5], %s324
          %326 = dma.done %s322, 128
        $region44: #{tpu_custom_call.1} parent=39 // pred_fallthru
          _
      $region40: #{tpu_custom_call.1} parent=5 // pred_fallthru
        _
    $region6: #{tpu_custom_call.1} parent=1 // loop_footer
      %s18 = sadd.s32 1, %s14
    $region7: #{tpu_custom_call.1} parent=1 // loop_footer_branch
      %13 = sbr.rel target = $region3
    $region8: #{tpu_custom_call.1} parent=1 // loop_exit
      _
    %327 = vsyncpa [#allocation3], 1
    %s328 = scalar_lea.sflag [#allocation3], 1
    %329 = vsyncpa %s328, 1
    %330 = vsyncpa [#allocation4], 1
    %s331 = scalar_lea.sflag [#allocation4], 1
    %332 = vsyncpa %s331, 1

</llo_original>
